<compile_context>
chip_gen: v5e
topology: v5e:2x2
jax: 0.10.0
libtpu: 0.0.40
codegen_flags: <defaults>
</compile_context>

<pallas_src>
import jax
import jax.numpy as jnp
import numpy as np
from jax import lax
from jax.experimental import pallas as pl
from jax.experimental.pallas import tpu as pltpu


def _refined_reciprocal(x):
    # EUP fast reciprocal (free bundle slot) + one Newton step -> ~f32 accurate.
    r = pl.reciprocal(x, approx=True)
    return r * (2.0 - x * r)


def attend_kernel(a_ref, b_ref, w1_ref, b1_ref, w2_ref, b2_ref,
                  beta_ref, alpha_ref):
    BB, TA, E = a_ref.shape
    _, TB, _ = b_ref.shape
    op_dtype = a_ref.dtype            # MXU operand dtype (f32 or bf16); no upcast

    W1 = w1_ref[...]                  # (E, H)  op_dtype
    W2 = w2_ref[...]                  # (H, H)  op_dtype
    b1 = b1_ref[...]                  # (1, H)  f32
    b2 = b2_ref[...]                  # (1, H)  f32

    # ---- shared MLP f, run ONCE per batch group -----------------------------
    # Stack the A-rows and B-rows of every batch element along the sublane
    # axis so a single (BB*(TA+TB), E) x (E, H) matmul pair feeds the MXU.
    a_blks = [a_ref[i] for i in range(BB)]          # each (TA, E)
    b_blks = [b_ref[i] for i in range(BB)]          # each (TB, E)
    x = jnp.concatenate(a_blks + b_blks, axis=0)    # (BB*(TA+TB), E)

    h = jnp.dot(x, W1, preferred_element_type=jnp.float32) + b1
    h = jnp.maximum(h, 0.0).astype(op_dtype)
    h = jnp.dot(h, W2, preferred_element_type=jnp.float32) + b2
    f_all = jnp.maximum(h, 0.0).astype(op_dtype)    # (BB*(TA+TB), H)

    f_A = f_all[:BB * TA]
    f_B = f_all[BB * TA:]

    nt_dims = (((1,), (1,)), ((), ()))   # contract last dims: fa @ fb^T, no transpose

    # ---- per batch element: e, two softmaxes, two bmm's ---------------------
    for i in range(BB):
        fa = f_A[i * TA:(i + 1) * TA]               # (TA, H)
        fb = f_B[i * TB:(i + 1) * TB]               # (TB, H)
        e = lax.dot_general(fa, fb, dimension_numbers=nt_dims,
                            preferred_element_type=jnp.float32)   # (TA, TB) f32

        # beta_i = softmax_rows(e) @ B_i   (normalization folded in after the dot)
        m_a = jnp.max(e, axis=1, keepdims=True)                    # (TA, 1)
        p_a = jnp.exp(e - m_a)                                     # (TA, TB)
        inv_a = _refined_reciprocal(jnp.sum(p_a, axis=1, keepdims=True))
        beta_i = jnp.dot(p_a.astype(op_dtype), b_blks[i],
                         preferred_element_type=jnp.float32) * inv_a   # (TA, E)
        beta_ref[i] = beta_i.astype(beta_ref.dtype)

        # alpha_i = softmax_cols(e)^T @ A_i : column stats computed on e
        # directly (no (TB, TA) copy of e); only the tiny normalized
        # probability matrix is reoriented (in op_dtype) for the MXU.
        m_b = jnp.max(e, axis=0, keepdims=True)                    # (1, TB)
        p_b = jnp.exp(e - m_b)                                     # (TA, TB)
        inv_b = _refined_reciprocal(jnp.sum(p_b, axis=0, keepdims=True))
        p_bt = (p_b * inv_b).T.astype(op_dtype)                    # (TB, TA)
        alpha_i = jnp.dot(p_bt, a_blks[i],
                          preferred_element_type=jnp.float32)      # (TB, E)
        alpha_ref[i] = alpha_i.astype(alpha_ref.dtype)


def _pick_batch_block(Bsz, TA, TB, E, H, itemsize):
    # Rows through the shared MLP per grid step: aim for ~256 (fills the
    # 256-wide MXUs on v6e/v7x; 128 already saturates v5e's 128x128 MXUs).
    bb = max(1, 256 // max(1, TA + TB))
    # Cap the per-group working set (~8 MiB) so it sits well below the 32 MiB
    # default scoped VMEM limit and v7x's 64 MiB physical VMEM.
    per_elem = ((TA + TB) * E * (2 * itemsize + 2 * 4)   # in blocks (x2 buf) + out
                + (TA + TB) * H * 4                      # f rows (f32)
                + 4 * TA * TB * 4)                       # e, p_a, p_b, p_b^T
    bb = max(1, min(bb, (8 << 20) // max(1, per_elem)))
    # Snap to a divisor of Bsz so the grid tiles the batch exactly.
    divisors = [d for d in range(1, Bsz + 1) if Bsz % d == 0]
    bb = max(d for d in divisors if d <= bb)
    # Keep at least two (parallel) grid steps when Bsz allows, so both v7x
    # TensorCores get work (v5e/v6e have a single TensorCore, unaffected).
    if Bsz >= 2 and Bsz // bb < 2:
        bb = max(d for d in divisors if Bsz // d >= 2)
    return bb
    # Note: for very long TA/TB a second grid axis tiling TA (with streamed
    # alpha accumulation) would be added; not needed at these shapes.


def attend(A, B, W1, b1, W2, b2, *, compute_dtype=None, batch_block=None):
    Bsz, TA, E = A.shape
    _, TB, _ = B.shape
    H = W1.shape[1]

    # Optional cast of the MXU operands (e.g. jnp.bfloat16 for native MXU
    # input); accumulation is always f32 inside the kernel.
    if compute_dtype is not None:
        A_c = A.astype(compute_dtype)
        B_c = B.astype(compute_dtype)
        W1_c = W1.astype(compute_dtype)
        W2_c = W2.astype(compute_dtype)
    else:
        A_c, B_c, W1_c, W2_c = A, B, W1, W2
    # Biases stay f32 — they are added to the f32 MXU accumulator, once per layer.
    b1_2d = b1.reshape(1, H).astype(jnp.float32)
    b2_2d = b2.reshape(1, H).astype(jnp.float32)

    in_itemsize = jnp.dtype(A_c.dtype).itemsize
    out_itemsize = jnp.dtype(A.dtype).itemsize
    BB = batch_block or _pick_batch_block(Bsz, TA, TB, E, H, in_itemsize)
    assert Bsz % BB == 0, "batch block must divide the batch size"
    num_groups = Bsz // BB

    grid_spec = pltpu.PrefetchScalarGridSpec(
        num_scalar_prefetch=0,
        grid=(num_groups,),
        in_specs=[
            pl.BlockSpec((BB, TA, E), lambda g: (g, 0, 0)),   # A group
            pl.BlockSpec((BB, TB, E), lambda g: (g, 0, 0)),   # B group
            pl.BlockSpec((E, H), lambda g: (0, 0)),           # W1 (constant)
            pl.BlockSpec((1, H), lambda g: (0, 0)),           # b1 (constant)
            pl.BlockSpec((H, H), lambda g: (0, 0)),           # W2 (constant)
            pl.BlockSpec((1, H), lambda g: (0, 0)),           # b2 (constant)
        ],
        out_specs=[
            pl.BlockSpec((BB, TA, E), lambda g: (g, 0, 0)),   # beta
            pl.BlockSpec((BB, TB, E), lambda g: (g, 0, 0)),   # alpha
        ],
    )
    # Note: at E=H=32 the 2x-buffered constant weight blocks cost a few KiB, so
    # single-buffering them (pl.Buffered(1)) is not worth the extra plumbing.

    flops = 2 * Bsz * ((TA + TB) * E * H + (TA + TB) * H * H
                       + TA * TB * H + 2 * TA * TB * E)
    bytes_accessed = ((A_c.size + B_c.size + W1_c.size + W2_c.size) * in_itemsize
                      + (b1.size + b2.size) * 4
                      + (A.size + B.size) * out_itemsize)
    cost = pl.CostEstimate(flops=int(flops),
                           transcendentals=int(2 * Bsz * TA * TB),
                           bytes_accessed=int(bytes_accessed))

    # Explicit VMEM budget: double-buffered blocks + in-kernel intermediates,
    # with headroom; capped at 40 MiB so the plan also fits v7x's 64 MiB VMEM.
    block_bytes = (2 * BB * (TA + TB) * E * (in_itemsize + out_itemsize)
                   + 2 * (E * H + H * H + 2 * H) * 4
                   + BB * (TA + TB) * H * 4
                   + 4 * TA * TB * 4)
    vmem_limit = int(min(max(4 * block_bytes, 8 << 20), 40 << 20))

    beta, alpha = pl.pallas_call(
        attend_kernel,
        out_shape=(
            jax.ShapeDtypeStruct((Bsz, TA, E), A.dtype),
            jax.ShapeDtypeStruct((Bsz, TB, E), B.dtype),
        ),
        grid_spec=grid_spec,
        compiler_params=pltpu.CompilerParams(
            dimension_semantics=("parallel",),
            vmem_limit_bytes=vmem_limit),
        cost_estimate=cost,
    )(A_c, B_c, W1_c, b1_2d, W2_c, b2_2d)
    return beta, alpha


def attend_ref(A, B, W1, b1, W2, b2):
    def f(x):
        h = jnp.maximum(x @ W1 + b1, 0.0)
        return jnp.maximum(h @ W2 + b2, 0.0)
    f_A, f_B = f(A), f(B)
    e = jnp.einsum("bae,bke->bak", f_A, f_B)
    beta = jnp.einsum("bak,bke->bae", jax.nn.softmax(e, axis=-1), B)
    alpha = jnp.einsum("bka,bae->bke",
                       jax.nn.softmax(jnp.swapaxes(e, 1, 2), axis=-1), A)
    return beta, alpha


if __name__ == "__main__":
    key = jax.random.PRNGKey(0)
    Bsz, TA, TB, E, H = 2, 8, 8, 32, 32

    k1, k2, k3, k4, k5, k6 = jax.random.split(key, 6)
    A = jax.random.normal(k1, (Bsz, TA, E), dtype=jnp.float32)
    B = jax.random.normal(k2, (Bsz, TB, E), dtype=jnp.float32)
    # Deterministic synthetic parameters for mlp(E, H): Linear(E,H), Linear(H,H)
    W1 = jax.random.normal(k3, (E, H), dtype=jnp.float32) * (1.0 / np.sqrt(E))
    b1 = jax.random.normal(k4, (H,), dtype=jnp.float32) * 0.01
    W2 = jax.random.normal(k5, (H, H), dtype=jnp.float32) * (1.0 / np.sqrt(H))
    b2 = jax.random.normal(k6, (H,), dtype=jnp.float32) * 0.01

    # f32-operand path: strict correctness check against the pure-JAX reference.
    beta, alpha = attend(A, B, W1, b1, W2, b2)
    jax.block_until_ready((beta, alpha))

    beta_ref, alpha_ref = attend_ref(A, B, W1, b1, W2, b2)
    # Tolerance covers the residual of the (Newton-refined) approx reciprocal
    # in the softmax normalization; everything else is f32-accumulated.
    np.testing.assert_allclose(np.asarray(beta), np.asarray(beta_ref),
                               rtol=1e-3, atol=1e-4)
    np.testing.assert_allclose(np.asarray(alpha), np.asarray(alpha_ref),
                               rtol=1e-3, atol=1e-4)

    # bf16 MXU-operand path (f32 accumulation inside): smoke run + sanity check.
    beta16, alpha16 = attend(A, B, W1, b1, W2, b2, compute_dtype=jnp.bfloat16)
    jax.block_until_ready((beta16, alpha16))
    assert beta16.shape == (Bsz, TA, E) and alpha16.shape == (Bsz, TB, E)
    assert np.all(np.isfinite(np.asarray(beta16, dtype=np.float32)))
    assert np.all(np.isfinite(np.asarray(alpha16, dtype=np.float32)))

    print("KERNEL_OK")
</pallas_src>

<mosaic_0001>
module attributes {stable_mosaic.version = 11 : i64} {
  func.func @attend_kernel(%arg0: i32, %arg1: memref<1x8x32xf32, #tpu.memory_space<vmem>>, %arg2: memref<1x8x32xf32, #tpu.memory_space<vmem>>, %arg3: memref<32x32xf32, #tpu.memory_space<vmem>>, %arg4: memref<1x32xf32, #tpu.memory_space<vmem>>, %arg5: memref<32x32xf32, #tpu.memory_space<vmem>>, %arg6: memref<1x32xf32, #tpu.memory_space<vmem>>, %arg7: memref<1x8x32xf32, #tpu.memory_space<vmem>>, %arg8: memref<1x8x32xf32, #tpu.memory_space<vmem>>) attributes {dimension_semantics = [#tpu.dimension_semantics<parallel>], iteration_bounds = array<i64: 2>, scalar_prefetch = 0 : i64, scratch_operands = 0 : i64, tpu.core_type = #tpu.core_type<tc>, window_params = [{transform_indices = @transform_0, window_bounds = array<i64: 1, 8, 32>}, {transform_indices = @transform_1, window_bounds = array<i64: 1, 8, 32>}, {pipeline_mode = #tpu.pipeline_mode<synchronous>, transform_indices = @transform_2, window_bounds = array<i64: 32, 32>}, {pipeline_mode = #tpu.pipeline_mode<synchronous>, transform_indices = @transform_3, window_bounds = array<i64: 1, 32>}, {pipeline_mode = #tpu.pipeline_mode<synchronous>, transform_indices = @transform_4, window_bounds = array<i64: 32, 32>}, {pipeline_mode = #tpu.pipeline_mode<synchronous>, transform_indices = @transform_5, window_bounds = array<i64: 1, 32>}, {transform_indices = @transform_6, window_bounds = array<i64: 1, 8, 32>}, {transform_indices = @transform_7, window_bounds = array<i64: 1, 8, 32>}]} {
    %c0 = arith.constant 0 : index
    %c0_0 = arith.constant 0 : index
    %0 = vector.load %arg3[%c0, %c0_0] : memref<32x32xf32, #tpu.memory_space<vmem>>, vector<32x32xf32>
    %c0_1 = arith.constant 0 : index
    %c0_2 = arith.constant 0 : index
    %1 = vector.load %arg5[%c0_1, %c0_2] : memref<32x32xf32, #tpu.memory_space<vmem>>, vector<32x32xf32>
    %c0_3 = arith.constant 0 : index
    %c0_4 = arith.constant 0 : index
    %2 = vector.load %arg4[%c0_3, %c0_4] : memref<1x32xf32, #tpu.memory_space<vmem>>, vector<1x32xf32>
    %c0_5 = arith.constant 0 : index
    %c0_6 = arith.constant 0 : index
    %3 = vector.load %arg6[%c0_5, %c0_6] : memref<1x32xf32, #tpu.memory_space<vmem>>, vector<1x32xf32>
    %c0_7 = arith.constant 0 : index
    %c0_8 = arith.constant 0 : index
    %c0_9 = arith.constant 0 : index
    %4 = vector.load %arg1[%c0_7, %c0_8, %c0_9] : memref<1x8x32xf32, #tpu.memory_space<vmem>>, vector<1x8x32xf32>
    %5 = vector.shape_cast %4 : vector<1x8x32xf32> to vector<8x32xf32>
    %c0_10 = arith.constant 0 : index
    %c0_11 = arith.constant 0 : index
    %c0_12 = arith.constant 0 : index
    %6 = vector.load %arg2[%c0_10, %c0_11, %c0_12] : memref<1x8x32xf32, #tpu.memory_space<vmem>>, vector<1x8x32xf32>
    %7 = vector.shape_cast %6 : vector<1x8x32xf32> to vector<8x32xf32>
    %8 = tpu.concatenate %5, %7 in 0 : vector<8x32xf32>, vector<8x32xf32> -> vector<16x32xf32>
    %cst = arith.constant dense<0.000000e+00> : vector<16x32xf32>
    %9 = tpu.matmul %8, %0, %cst {dimension_numbers = #tpu.dot_dimension_numbers<[1], [0], [0], [1], [0, 0, 1, 1], [], []>} : vector<16x32xf32>, vector<32x32xf32>, vector<16x32xf32> -> vector<16x32xf32>
    %10 = vector.broadcast %2 : vector<1x32xf32> to vector<16x32xf32>
    %11 = arith.addf %9, %10 : vector<16x32xf32>
    %cst_13 = arith.constant 0.000000e+00 : f32
    %12 = vector.broadcast %cst_13 : f32 to vector<16x32xf32>
    %13 = arith.maximumf %11, %12 : vector<16x32xf32>
    %cst_14 = arith.constant dense<0.000000e+00> : vector<16x32xf32>
    %14 = tpu.matmul %13, %1, %cst_14 {dimension_numbers = #tpu.dot_dimension_numbers<[1], [0], [0], [1], [0, 0, 1, 1], [], []>} : vector<16x32xf32>, vector<32x32xf32>, vector<16x32xf32> -> vector<16x32xf32>
    %15 = vector.broadcast %3 : vector<1x32xf32> to vector<16x32xf32>
    %16 = arith.addf %14, %15 : vector<16x32xf32>
    %cst_15 = arith.constant 0.000000e+00 : f32
    %17 = vector.broadcast %cst_15 : f32 to vector<16x32xf32>
    %18 = arith.maximumf %16, %17 : vector<16x32xf32>
    %19 = vector.extract_strided_slice %18 {offsets = [0, 0], sizes = [8, 32], strides = [1, 1]} : vector<16x32xf32> to vector<8x32xf32>
    %20 = vector.extract_strided_slice %18 {offsets = [8, 0], sizes = [8, 32], strides = [1, 1]} : vector<16x32xf32> to vector<8x32xf32>
    %cst_16 = arith.constant dense<0.000000e+00> : vector<8x8xf32>
    %21 = tpu.matmul %19, %20, %cst_16 {dimension_numbers = #tpu.dot_dimension_numbers<[1], [1], [0], [0], [0, 0, 1, 0], [], []>} : vector<8x32xf32>, vector<8x32xf32>, vector<8x8xf32> -> vector<8x8xf32>
    %cst_17 = arith.constant dense<0xFF800000> : vector<8xf32>
    %22 = vector.multi_reduction <maximumf>, %21, %cst_17 [1] : vector<8x8xf32> to vector<8xf32>
    %23 = vector.shape_cast %22 : vector<8xf32> to vector<8x1xf32>
    %24 = vector.broadcast %23 : vector<8x1xf32> to vector<8x8xf32>
    %25 = arith.subf %21, %24 : vector<8x8xf32>
    %26 = math.exp %25 : vector<8x8xf32>
    %cst_18 = arith.constant dense<0.000000e+00> : vector<8xf32>
    %27 = vector.multi_reduction <add>, %26, %cst_18 [1] : vector<8x8xf32> to vector<8xf32>
    %28 = vector.shape_cast %27 : vector<8xf32> to vector<8x1xf32>
    %29 = tpu.reciprocal %28 {approx = true} : vector<8x1xf32> -> vector<8x1xf32>
    %30 = arith.mulf %28, %29 : vector<8x1xf32>
    %cst_19 = arith.constant 2.000000e+00 : f32
    %31 = vector.broadcast %cst_19 : f32 to vector<8x1xf32>
    %32 = arith.subf %31, %30 : vector<8x1xf32>
    %33 = arith.mulf %29, %32 : vector<8x1xf32>
    %cst_20 = arith.constant dense<0.000000e+00> : vector<8x32xf32>
    %34 = tpu.matmul %26, %7, %cst_20 {dimension_numbers = #tpu.dot_dimension_numbers<[1], [0], [0], [1], [0, 0, 1, 1], [], []>} : vector<8x8xf32>, vector<8x32xf32>, vector<8x32xf32> -> vector<8x32xf32>
    %35 = vector.broadcast %33 : vector<8x1xf32> to vector<8x32xf32>
    %36 = arith.mulf %34, %35 : vector<8x32xf32>
    %c0_21 = arith.constant 0 : index
    %c0_22 = arith.constant 0 : index
    %c0_23 = arith.constant 0 : index
    %37 = vector.load %arg7[%c0_21, %c0_22, %c0_23] : memref<1x8x32xf32, #tpu.memory_space<vmem>>, vector<1x8x32xf32>
    %38 = vector.shape_cast %37 : vector<1x8x32xf32> to vector<8x32xf32>
    %39 = vector.shape_cast %36 : vector<8x32xf32> to vector<1x8x32xf32>
    tpu.vector_store %arg7[%c0_21, %c0_22, %c0_23], %39 {strides = array<i32>} : memref<1x8x32xf32, #tpu.memory_space<vmem>>, vector<1x8x32xf32>,
    %cst_24 = arith.constant dense<0xFF800000> : vector<8xf32>
    %40 = vector.multi_reduction <maximumf>, %21, %cst_24 [0] : vector<8x8xf32> to vector<8xf32>
    %41 = vector.shape_cast %40 : vector<8xf32> to vector<1x8xf32>
    %42 = vector.broadcast %41 : vector<1x8xf32> to vector<8x8xf32>
    %43 = arith.subf %21, %42 : vector<8x8xf32>
    %44 = math.exp %43 : vector<8x8xf32>
    %cst_25 = arith.constant dense<0.000000e+00> : vector<8xf32>
    %45 = vector.multi_reduction <add>, %44, %cst_25 [0] : vector<8x8xf32> to vector<8xf32>
    %46 = vector.shape_cast %45 : vector<8xf32> to vector<1x8xf32>
    %47 = tpu.reciprocal %46 {approx = true} : vector<1x8xf32> -> vector<1x8xf32>
    %48 = arith.mulf %46, %47 : vector<1x8xf32>
    %cst_26 = arith.constant 2.000000e+00 : f32
    %49 = vector.broadcast %cst_26 : f32 to vector<1x8xf32>
    %50 = arith.subf %49, %48 : vector<1x8xf32>
    %51 = arith.mulf %47, %50 : vector<1x8xf32>
    %52 = vector.broadcast %51 : vector<1x8xf32> to vector<8x8xf32>
    %53 = arith.mulf %44, %52 : vector<8x8xf32>
    %54 = tpu.transpose %53, [1, 0] : vector<8x8xf32> -> vector<8x8xf32>
    %cst_27 = arith.constant dense<0.000000e+00> : vector<8x32xf32>
    %55 = tpu.matmul %54, %5, %cst_27 {dimension_numbers = #tpu.dot_dimension_numbers<[1], [0], [0], [1], [0, 0, 1, 1], [], []>} : vector<8x8xf32>, vector<8x32xf32>, vector<8x32xf32> -> vector<8x32xf32>
    %c0_28 = arith.constant 0 : index
    %c0_29 = arith.constant 0 : index
    %c0_30 = arith.constant 0 : index
    %56 = vector.load %arg8[%c0_28, %c0_29, %c0_30] : memref<1x8x32xf32, #tpu.memory_space<vmem>>, vector<1x8x32xf32>
    %57 = vector.shape_cast %56 : vector<1x8x32xf32> to vector<8x32xf32>
    %58 = vector.shape_cast %55 : vector<8x32xf32> to vector<1x8x32xf32>
    tpu.vector_store %arg8[%c0_28, %c0_29, %c0_30], %58 {strides = array<i32>} : memref<1x8x32xf32, #tpu.memory_space<vmem>>, vector<1x8x32xf32>,
    return
  }
  func.func @transform_0(%arg0: i32) -> (i32, i32, i32) {
    %c0_i32 = arith.constant 0 : i32
    %c0_i32_0 = arith.constant 0 : i32
    %c0_i32_1 = arith.constant 0 : i32
    return %arg0, %c0_i32, %c0_i32_0 : i32, i32, i32
  }
  func.func @transform_1(%arg0: i32) -> (i32, i32, i32) {
    %c0_i32 = arith.constant 0 : i32
    %c0_i32_0 = arith.constant 0 : i32
    %c0_i32_1 = arith.constant 0 : i32
    return %arg0, %c0_i32, %c0_i32_0 : i32, i32, i32
  }
  func.func @transform_2(%arg0: i32) -> (i32, i32) {
    %c0_i32 = arith.constant 0 : i32
    %c0_i32_0 = arith.constant 0 : i32
    %c0_i32_1 = arith.constant 0 : i32
    return %c0_i32, %c0_i32_0 : i32, i32
  }
  func.func @transform_3(%arg0: i32) -> (i32, i32) {
    %c0_i32 = arith.constant 0 : i32
    %c0_i32_0 = arith.constant 0 : i32
    %c0_i32_1 = arith.constant 0 : i32
    return %c0_i32, %c0_i32_0 : i32, i32
  }
  func.func @transform_4(%arg0: i32) -> (i32, i32) {
    %c0_i32 = arith.constant 0 : i32
    %c0_i32_0 = arith.constant 0 : i32
    %c0_i32_1 = arith.constant 0 : i32
    return %c0_i32, %c0_i32_0 : i32, i32
  }
  func.func @transform_5(%arg0: i32) -> (i32, i32) {
    %c0_i32 = arith.constant 0 : i32
    %c0_i32_0 = arith.constant 0 : i32
    %c0_i32_1 = arith.constant 0 : i32
    return %c0_i32, %c0_i32_0 : i32, i32
  }
  func.func @transform_6(%arg0: i32) -> (i32, i32, i32) {
    %c0_i32 = arith.constant 0 : i32
    %c0_i32_0 = arith.constant 0 : i32
    %c0_i32_1 = arith.constant 0 : i32
    return %arg0, %c0_i32, %c0_i32_0 : i32, i32, i32
  }
  func.func @transform_7(%arg0: i32) -> (i32, i32, i32) {
    %c0_i32 = arith.constant 0 : i32
    %c0_i32_0 = arith.constant 0 : i32
    %c0_i32_1 = arith.constant 0 : i32
    return %arg0, %c0_i32, %c0_i32_0 : i32, i32, i32
  }
}

</mosaic_0001>

<llo_original>
// kernel: tpu_custom_call.1
$region0: #{tpu_custom_call.1}
  #allocation0 [shape = 'u32[]', space=smem, size = 0x4, offset = 0x4, fixed_abs, tag = 'smem constant byte address 0x4 - core index']
  #allocation1 [shape = 'u32[72,128]{1,0:T(1,128)}', space=vmem, size = 0x9000, scoped, tag = 'internal scratch']
  %s0 = inlined_call_operand.hbm [shape: f32[2,8,32], index: 0, kind: input, shape index: {}]
  %s1 = inlined_call_operand.hbm [shape: f32[2,8,32], index: 1, kind: input, shape index: {}]
  %s2 = inlined_call_operand.hbm [shape: f32[32,32], index: 2, kind: input, shape index: {}]
  %s3 = inlined_call_operand.vmem [shape: f32[1,32], index: 3, kind: input, shape index: {}]
  %s4 = inlined_call_operand.hbm [shape: f32[32,32], index: 4, kind: input, shape index: {}]
  %s5 = inlined_call_operand.vmem [shape: f32[1,32], index: 5, kind: input, shape index: {}]
  %s6 = inlined_call_operand.hbm [shape: f32[2,8,32], index: 6, kind: output, shape index: {0}]
  %s7 = inlined_call_operand.hbm [shape: f32[2,8,32], index: 7, kind: output, shape index: {1}]
  %8 = xla_tuple %s6, %s7
  %s9 = sld [smem:[#allocation0]]
  $region81: #{tpu_custom_call.1} parent=0
    _
  %s11 = ssub.s32 1, %s9
  %s12 = scalar_select 0, %s11, %s9
  $region1: #{tpu_custom_call.1} parent=0
    #allocation2 [shape = 'u8[8192]{0}', space=vmem, size = 0x2000, scoped, tag = 'input window, operand 0']
    #allocation3 [shape = 's32[2]{0}', space=sflag, size = 0x8, scoped, tag = 'scoped memory for tpu_custom_call.1']
    #allocation4 [shape = 's32[2]{0}', space=sflag, size = 0x8, scoped, tag = 'scoped memory for tpu_custom_call.1']
    #allocation5 [shape = 'u8[8192]{0}', space=vmem, size = 0x2000, scoped, tag = 'input window, operand 1']
    #allocation6 [shape = 's32[2]{0}', space=sflag, size = 0x8, scoped, tag = 'scoped memory for tpu_custom_call.1']
    #allocation7 [shape = 'u8[16384]{0}', space=vmem, size = 0x4000, scoped, tag = 'input window, operand 2, single buffered']
    #allocation8 [shape = 'u8[16384]{0}', space=vmem, size = 0x4000, scoped, tag = 'input window, operand 4, single buffered']
    #allocation9 [shape = 's32[1]{0}', space=sflag, size = 0x4, scoped, tag = 'scoped memory for tpu_custom_call.1']
    #allocation10 [shape = 'u8[8192]{0}', space=vmem, size = 0x2000, scoped, tag = 'output window, operand 0']
    #allocation11 [shape = 'u8[8192]{0}', space=vmem, size = 0x2000, scoped, tag = 'output window, operand 1']
    #allocation12 [shape = 's32[2]{0}', space=sflag, size = 0x8, scoped, tag = 'scoped memory for tpu_custom_call.1']
    %13 = vsyncpa [#allocation3], 0
    %s14 = scalar_lea.sflag [#allocation3], 1
    %15 = vsyncpa %s14, 0
    %16 = vsyncpa [#allocation6], 0
    %s17 = scalar_lea.sflag [#allocation6], 1
    %18 = vsyncpa %s17, 0
    %19 = vsyncpa [#allocation9], 0
    %20 = vsyncpa [#allocation4], 0
    %s21 = scalar_lea.sflag [#allocation4], 1
    %22 = vsyncpa %s21, 0
    %23 = vsyncpa [#allocation12], 0
    %s24 = scalar_lea.sflag [#allocation12], 1
    %25 = vsyncpa %s24, 0
    loop: start=0, step=1, limit=4
    $region2: #{tpu_custom_call.1} parent=1 // loop_pre_header
      _
    $region3: #{tpu_custom_call.1} parent=1 // loop_header
      %s27 = sphi 0, %s31
      %p28 = scmp.ge.s32.totalorder %s27, 4
      %s37 = sphi 0, %s39
      %s40 = sphi 0, %s37
      %s41 = sphi 0, %s40
      %s57 = sphi 0, %s41
      %s63 = sphi 0, %s65
      %s66 = sphi 0, %s63
      %s67 = sphi 0, %s66
      %s83 = sphi 0, %s67
      %s87 = sphi 0, %s87
      %s89 = sphi 0, %s87
      %s90 = sphi 0, %s89
      %s104 = sphi 0, %s90
      %s108 = sphi 0, %s108
      %s110 = sphi 0, %s108
      %s111 = sphi 0, %s110
      %s125 = sphi 0, %s111
      %s129 = sphi 0, %s129
      %s131 = sphi 0, %s129
      %s132 = sphi 0, %s131
      %s146 = sphi 0, %s132
      %s150 = sphi 0, %s150
      %s152 = sphi 0, %s150
      %s153 = sphi 0, %s152
      %s167 = sphi 0, %s153
      %s173 = sphi 0, %s175
      %s176 = sphi 0, %s173
      %s177 = sphi 0, %s176
      %s193 = sphi 0, %s177
      %s199 = sphi 0, %s201
      %s202 = sphi 0, %s199
      %s203 = sphi 0, %s202
      %s219 = sphi 0, %s203
    $region4: #{tpu_custom_call.1} parent=1 // loop_header_branch
      %30 = sbr.rel (%p28) target = $region8
    $region5: #{tpu_custom_call.1} parent=1 // loop_body
      %s32 = ssub.s32 %s27, 1
      %s33 = ssub.s32 %s27, 2
      %s34 = sadd.s32 %s27, 1
      %s35 = ssub.s32 %s27, %s34
      %p36 = scmp.eq.s32.totalorder %s35, 0
      %s38 = sadd.s32 %s37, 1
      %s39 = scalar_select %p36, %s37, %s38
      %p42 = pneg %p36
      %p43 = scmp.eq.s32.totalorder %s27, 1
      %p44 = por %p42, %p43
      %p45 = scmp.ne.s32.totalorder %s37, %s40
      %p46 = scmp.eq.s32.totalorder %s27, 0
      %p47 = por %p45, %p46
      %p48 = scmp.ne.s32.totalorder %s37, %s40
      %p49 = scmp.eq.s32.totalorder %s32, 1
      %p50 = por %p48, %p49
      %p51 = scmp.ne.s32.totalorder %s40, %s41
      %p52 = scmp.eq.s32.totalorder %s32, 0
      %p53 = por %p51, %p52
      %p54 = scmp.ne.s32.totalorder %s40, %s41
      %p55 = scmp.eq.s32.totalorder %s33, 1
      %p56 = por %p54, %p55
      %p58 = scmp.ne.s32.totalorder %s41, %s57
      %p59 = scmp.eq.s32.totalorder %s33, 0
      %p60 = por %p58, %p59
      %s61 = ssub.s32 %s27, %s34
      %p62 = scmp.eq.s32.totalorder %s61, 0
      %s64 = sadd.s32 %s63, 1
      %s65 = scalar_select %p62, %s63, %s64
      %p68 = pneg %p62
      %p69 = scmp.eq.s32.totalorder %s27, 1
      %p70 = por %p68, %p69
      %p71 = scmp.ne.s32.totalorder %s63, %s66
      %p72 = scmp.eq.s32.totalorder %s27, 0
      %p73 = por %p71, %p72
      %p74 = scmp.ne.s32.totalorder %s63, %s66
      %p75 = scmp.eq.s32.totalorder %s32, 1
      %p76 = por %p74, %p75
      %p77 = scmp.ne.s32.totalorder %s66, %s67
      %p78 = scmp.eq.s32.totalorder %s32, 0
      %p79 = por %p77, %p78
      %p80 = scmp.ne.s32.totalorder %s66, %s67
      %p81 = scmp.eq.s32.totalorder %s33, 1
      %p82 = por %p80, %p81
      %p84 = scmp.ne.s32.totalorder %s67, %s83
      %p85 = scmp.eq.s32.totalorder %s33, 0
      %p86 = por %p84, %p85
      %s88 = sadd.s32 %s87, 1
      %p91 = scmp.eq.s32.totalorder %s27, 1
      %p92 = scmp.ne.s32.totalorder %s87, %s89
      %p93 = scmp.eq.s32.totalorder %s27, 0
      %p94 = por %p92, %p93
      %p95 = scmp.ne.s32.totalorder %s87, %s89
      %p96 = scmp.eq.s32.totalorder %s32, 1
      %p97 = por %p95, %p96
      %p98 = scmp.ne.s32.totalorder %s89, %s90
      %p99 = scmp.eq.s32.totalorder %s32, 0
      %p100 = por %p98, %p99
      %p101 = scmp.ne.s32.totalorder %s89, %s90
      %p102 = scmp.eq.s32.totalorder %s33, 1
      %p103 = por %p101, %p102
      %p105 = scmp.ne.s32.totalorder %s90, %s104
      %p106 = scmp.eq.s32.totalorder %s33, 0
      %p107 = por %p105, %p106
      %s109 = sadd.s32 %s108, 1
      %p112 = scmp.eq.s32.totalorder %s27, 1
      %p113 = scmp.ne.s32.totalorder %s108, %s110
      %p114 = scmp.eq.s32.totalorder %s27, 0
      %p115 = por %p113, %p114
      %p116 = scmp.ne.s32.totalorder %s108, %s110
      %p117 = scmp.eq.s32.totalorder %s32, 1
      %p118 = por %p116, %p117
      %p119 = scmp.ne.s32.totalorder %s110, %s111
      %p120 = scmp.eq.s32.totalorder %s32, 0
      %p121 = por %p119, %p120
      %p122 = scmp.ne.s32.totalorder %s110, %s111
      %p123 = scmp.eq.s32.totalorder %s33, 1
      %p124 = por %p122, %p123
      %p126 = scmp.ne.s32.totalorder %s111, %s125
      %p127 = scmp.eq.s32.totalorder %s33, 0
      %p128 = por %p126, %p127
      %s130 = sadd.s32 %s129, 1
      %p133 = scmp.eq.s32.totalorder %s27, 1
      %p134 = scmp.ne.s32.totalorder %s129, %s131
      %p135 = scmp.eq.s32.totalorder %s27, 0
      %p136 = por %p134, %p135
      %p137 = scmp.ne.s32.totalorder %s129, %s131
      %p138 = scmp.eq.s32.totalorder %s32, 1
      %p139 = por %p137, %p138
      %p140 = scmp.ne.s32.totalorder %s131, %s132
      %p141 = scmp.eq.s32.totalorder %s32, 0
      %p142 = por %p140, %p141
      %p143 = scmp.ne.s32.totalorder %s131, %s132
      %p144 = scmp.eq.s32.totalorder %s33, 1
      %p145 = por %p143, %p144
      %p147 = scmp.ne.s32.totalorder %s132, %s146
      %p148 = scmp.eq.s32.totalorder %s33, 0
      %p149 = por %p147, %p148
      %s151 = sadd.s32 %s150, 1
      %p154 = scmp.eq.s32.totalorder %s27, 1
      %p155 = scmp.ne.s32.totalorder %s150, %s152
      %p156 = scmp.eq.s32.totalorder %s27, 0
      %p157 = por %p155, %p156
      %p158 = scmp.ne.s32.totalorder %s150, %s152
      %p159 = scmp.eq.s32.totalorder %s32, 1
      %p160 = por %p158, %p159
      %p161 = scmp.ne.s32.totalorder %s152, %s153
      %p162 = scmp.eq.s32.totalorder %s32, 0
      %p163 = por %p161, %p162
      %p164 = scmp.ne.s32.totalorder %s152, %s153
      %p165 = scmp.eq.s32.totalorder %s33, 1
      %p166 = por %p164, %p165
      %p168 = scmp.ne.s32.totalorder %s153, %s167
      %p169 = scmp.eq.s32.totalorder %s33, 0
      %p170 = por %p168, %p169
      %s171 = ssub.s32 %s27, %s34
      %p172 = scmp.eq.s32.totalorder %s171, 0
      %s174 = sadd.s32 %s173, 1
      %s175 = scalar_select %p172, %s173, %s174
      %p178 = pneg %p172
      %p179 = scmp.eq.s32.totalorder %s27, 1
      %p180 = por %p178, %p179
      %p181 = scmp.ne.s32.totalorder %s173, %s176
      %p182 = scmp.eq.s32.totalorder %s27, 0
      %p183 = por %p181, %p182
      %p184 = scmp.ne.s32.totalorder %s173, %s176
      %p185 = scmp.eq.s32.totalorder %s32, 1
      %p186 = por %p184, %p185
      %p187 = scmp.ne.s32.totalorder %s176, %s177
      %p188 = scmp.eq.s32.totalorder %s32, 0
      %p189 = por %p187, %p188
      %p190 = scmp.ne.s32.totalorder %s176, %s177
      %p191 = scmp.eq.s32.totalorder %s33, 1
      %p192 = por %p190, %p191
      %p194 = scmp.ne.s32.totalorder %s177, %s193
      %p195 = scmp.eq.s32.totalorder %s33, 0
      %p196 = por %p194, %p195
      %s197 = ssub.s32 %s27, %s34
      %p198 = scmp.eq.s32.totalorder %s197, 0
      %s200 = sadd.s32 %s199, 1
      %s201 = scalar_select %p198, %s199, %s200
      %p204 = pneg %p198
      %p205 = scmp.eq.s32.totalorder %s27, 1
      %p206 = por %p204, %p205
      %p207 = scmp.ne.s32.totalorder %s199, %s202
      %p208 = scmp.eq.s32.totalorder %s27, 0
      %p209 = por %p207, %p208
      %p210 = scmp.ne.s32.totalorder %s199, %s202
      %p211 = scmp.eq.s32.totalorder %s32, 1
      %p212 = por %p210, %p211
      %p213 = scmp.ne.s32.totalorder %s202, %s203
      %p214 = scmp.eq.s32.totalorder %s32, 0
      %p215 = por %p213, %p214
      %p216 = scmp.ne.s32.totalorder %s202, %s203
      %p217 = scmp.eq.s32.totalorder %s33, 1
      %p218 = por %p216, %p217
      %p220 = scmp.ne.s32.totalorder %s203, %s219
      %p221 = scmp.eq.s32.totalorder %s33, 0
      %p222 = por %p220, %p221
      %p223 = scmp.le.s32.totalorder 1, %s27
      %p224 = scmp.lt.s32.totalorder %s27, 3
      %p225 = pnand %p223, %p224
      %p226 = pneg %p225
      // Predicated region
      $region9: #{tpu_custom_call.1} parent=5 // pred_check
        _
      $region10: #{tpu_custom_call.1} parent=5 // pred_check_branch
        %228 = sbr.rel (%p225) target = $region12
      $region11: #{tpu_custom_call.1} parent=5 // pred_region
        %s229 = ssub.s32 %s27, 1
        // Predicated region
        $region13: #{tpu_custom_call.1} parent=11 // pred_check
          %p230 = pneg %p100
        $region14: #{tpu_custom_call.1} parent=11 // pred_check_branch
          %232 = sbr.rel (%p230) target = $region16
        $region15: #{tpu_custom_call.1} parent=11 // pred_region
          %234 = vsyncadd [#allocation6], 0
          %s235 = sshll.u32 %s2, 4
          %s236 = int_to_ptr.hbm [resolvable:$true] %s235
          %s237 = sshll.u32 [#allocation7], 4
          %s238 = int_to_ptr.vmem [resolvable:$true] %s237
          %243 = dma.hbm_to_vmem [thread:$0]  %s236, 512, %s238, [#allocation6], 128, 128, 8
        $region16: #{tpu_custom_call.1} parent=11 // pred_fallthru
          _
        // Predicated region
        $region17: #{tpu_custom_call.1} parent=11 // pred_check
          %p244 = pneg %p121
        $region18: #{tpu_custom_call.1} parent=11 // pred_check_branch
          %246 = sbr.rel (%p244) target = $region20
        $region19: #{tpu_custom_call.1} parent=11 // pred_region
          _
        $region20: #{tpu_custom_call.1} parent=11 // pred_fallthru
          _
        // Predicated region
        $region21: #{tpu_custom_call.1} parent=11 // pred_check
          %p247 = pneg %p142
        $region22: #{tpu_custom_call.1} parent=11 // pred_check_branch
          %249 = sbr.rel (%p247) target = $region24
        $region23: #{tpu_custom_call.1} parent=11 // pred_region
          %251 = vsyncadd [#allocation9], 0
          %s252 = sshll.u32 %s4, 4
          %s253 = int_to_ptr.hbm [resolvable:$true] %s252
          %s254 = sshll.u32 [#allocation8], 4
          %s255 = int_to_ptr.vmem [resolvable:$true] %s254
          %260 = dma.hbm_to_vmem [thread:$0]  %s253, 512, %s255, [#allocation9], 128, 128, 8
        $region24: #{tpu_custom_call.1} parent=11 // pred_fallthru
          _
        // Predicated region
        $region25: #{tpu_custom_call.1} parent=11 // pred_check
          %p261 = pneg %p163
        $region26: #{tpu_custom_call.1} parent=11 // pred_check_branch
          %263 = sbr.rel (%p261) target = $region28
        $region27: #{tpu_custom_call.1} parent=11 // pred_region
          _
        $region28: #{tpu_custom_call.1} parent=11 // pred_fallthru
          _
      $region12: #{tpu_custom_call.1} parent=5 // pred_fallthru
        _
      %p264 = scmp.lt.s32.totalorder %s27, 2
      // Predicated region
      $region29: #{tpu_custom_call.1} parent=5 // pred_check
        %p265 = pneg %p264
      $region30: #{tpu_custom_call.1} parent=5 // pred_check_branch
        %267 = sbr.rel (%p265) target = $region32
      $region31: #{tpu_custom_call.1} parent=5 // pred_region
        // Predicated region
        $region33: #{tpu_custom_call.1} parent=31 // pred_check
          %p268 = pneg %p47
        $region34: #{tpu_custom_call.1} parent=31 // pred_check_branch
          %270 = sbr.rel (%p268) target = $region36
        $region35: #{tpu_custom_call.1} parent=31 // pred_region
          %s271 = sand.u32 %s37, 1
          %s272 = scalar_lea.sflag [#allocation3], %s271
          %s273 = sand.u32 %s37, 1
          %s274 = smul.addr %s273, 8
          %s275 = scalar_lea.vmem [#allocation2], %s274
          %277 = vsyncadd %s272, 0
          %s278 = smul.addr %s27, 8
          %s279 = scalar_lea.hbm %s0, %s278
          %s281 = sshll.u32 %s279, 4
          %s282 = int_to_ptr.hbm [resolvable:$true] %s281
          %s283 = sshll.u32 %s275, 4
          %s284 = int_to_ptr.vmem [resolvable:$true] %s283
          %286 = dma.hbm_to_vmem [thread:$0]  %s282, 128, %s284, %s272
        $region36: #{tpu_custom_call.1} parent=31 // pred_fallthru
          _
        // Predicated region
        $region37: #{tpu_custom_call.1} parent=31 // pred_check
          %p287 = pneg %p73
        $region38: #{tpu_custom_call.1} parent=31 // pred_check_branch
          %289 = sbr.rel (%p287) target = $region40
        $region39: #{tpu_custom_call.1} parent=31 // pred_region
          %s290 = sand.u32 %s27, 1
          %s291 = scalar_lea.sflag [#allocation6], %s290
          %s292 = sand.u32 %s63, 1
          %s293 = smul.addr %s292, 8
          %s294 = scalar_lea.vmem [#allocation5], %s293
          %296 = vsyncadd %s291, 0
          %s297 = smul.addr %s27, 8
          %s298 = scalar_lea.hbm %s1, %s297
          %s300 = sshll.u32 %s298, 4
          %s301 = int_to_ptr.hbm [resolvable:$true] %s300
          %s302 = sshll.u32 %s294, 4
          %s303 = int_to_ptr.vmem [resolvable:$true] %s302
          %305 = dma.hbm_to_vmem [thread:$0]  %s301, 128, %s303, %s291
        $region40: #{tpu_custom_call.1} parent=31 // pred_fallthru
          _
      $region32: #{tpu_custom_call.1} parent=5 // pred_fallthru
        _
      %p306 = scmp.le.s32.totalorder 1, %s27
      %p307 = scmp.lt.s32.totalorder %s27, 3
      %p308 = pnand %p306, %p307
      %p309 = pneg %p308
      // Predicated region
      $region41: #{tpu_custom_call.1} parent=5 // pred_check
        _
      $region42: #{tpu_custom_call.1} parent=5 // pred_check_branch
        %311 = sbr.rel (%p308) target = $region44
      $region43: #{tpu_custom_call.1} parent=5 // pred_region
        %s312 = ssub.s32 %s27, 1
        %s313 = sand.u32 %s40, 1
        %s314 = scalar_lea.sflag [#allocation3], %s313
        %s315 = sand.u32 %s40, 1
        %s316 = smul.addr %s315, 8
        %s317 = scalar_lea.vmem [#allocation2], %s316
        // Predicated region
        $region45: #{tpu_custom_call.1} parent=43 // pred_check
          %p318 = pneg %p53
        $region46: #{tpu_custom_call.1} parent=43 // pred_check_branch
          %320 = sbr.rel (%p318) target = $region48
        $region47: #{tpu_custom_call.1} parent=43 // pred_region
          %322 = dma.done %s314, 128
        $region48: #{tpu_custom_call.1} parent=43 // pred_fallthru
          _
        %s323 = sand.u32 %s32, 1
        %s324 = scalar_lea.sflag [#allocation6], %s323
        %s325 = sand.u32 %s66, 1
        %s326 = smul.addr %s325, 8
        %s327 = scalar_lea.vmem [#allocation5], %s326
        // Predicated region
        $region49: #{tpu_custom_call.1} parent=43 // pred_check
          %p328 = pneg %p79
        $region50: #{tpu_custom_call.1} parent=43 // pred_check_branch
          %330 = sbr.rel (%p328) target = $region52
        $region51: #{tpu_custom_call.1} parent=43 // pred_region
          %332 = dma.done %s324, 128
        $region52: #{tpu_custom_call.1} parent=43 // pred_fallthru
          _
        // Predicated region
        $region53: #{tpu_custom_call.1} parent=43 // pred_check
          %p333 = pneg %p100
        $region54: #{tpu_custom_call.1} parent=43 // pred_check_branch
          %335 = sbr.rel (%p333) target = $region56
        $region55: #{tpu_custom_call.1} parent=43 // pred_region
          %337 = dma.done [#allocation6], 512
        $region56: #{tpu_custom_call.1} parent=43 // pred_fallthru
          _
        // Predicated region
        $region57: #{tpu_custom_call.1} parent=43 // pred_check
          %p338 = pneg %p142
        $region58: #{tpu_custom_call.1} parent=43 // pred_check_branch
          %340 = sbr.rel (%p338) target = $region60
        $region59: #{tpu_custom_call.1} parent=43 // pred_region
          %342 = dma.done [#allocation9], 512
        $region60: #{tpu_custom_call.1} parent=43 // pred_fallthru
          _
        %s343 = sand.u32 %s40, 1
        %s344 = scalar_lea.sflag [#allocation3], %s343
        %s345 = sand.u32 %s40, 1
        %s346 = smul.addr %s345, 8
        %s347 = scalar_lea.vmem [#allocation2], %s346
        %p348 = pneg %p53
        %p349 = pneg %p50
        %s350 = sand.u32 %s32, 1
        %s351 = scalar_lea.sflag [#allocation6], %s350
        %s352 = sand.u32 %s66, 1
        %s353 = smul.addr %s352, 8
        %s354 = scalar_lea.vmem [#allocation5], %s353
        %p355 = pneg %p79
        %p356 = pneg %p76
        %p357 = pneg %p100
        %p358 = pneg %p97
        %p359 = pneg %p121
        %p360 = pneg %p118
        %p361 = pneg %p142
        %p362 = pneg %p139
        %p363 = pneg %p163
        %p364 = pneg %p160
        %p365 = pneg %p189
        %p366 = pneg %p186
        %s367 = sand.u32 %s176, 1
        %s368 = scalar_lea.sflag [#allocation4], %s367
        %s369 = sand.u32 %s176, 1
        %s370 = smul.addr %s369, 8
        %s371 = scalar_lea.vmem [#allocation10], %s370
        %p372 = pneg %p215
        %p373 = pneg %p212
        %s374 = sand.u32 %s202, 1
        %s375 = scalar_lea.sflag [#allocation12], %s374
        %s376 = sand.u32 %s202, 1
        %s377 = smul.addr %s376, 8
        %s378 = scalar_lea.vmem [#allocation11], %s377
        %v379 = vld [vmem:[#allocation7] sm:$0xff]
        %v380 = vld [vmem:[#allocation7 + $0x8] sm:$0xff]
        %v381 = vld [vmem:[#allocation7 + $0x10] sm:$0xff]
        %v382 = vld [vmem:[#allocation7 + $0x18] sm:$0xff]
        %v383 = vld [vmem:[#allocation8] sm:$0xff]
        %v384 = vld [vmem:[#allocation8 + $0x8] sm:$0xff]
        %v385 = vld [vmem:[#allocation8 + $0x10] sm:$0xff]
        %v386 = vld [vmem:[#allocation8 + $0x18] sm:$0xff]
        %v387 = vld [vmem:[%s3] sm:$0x1]
        %v388 = vld [vmem:[%s5] sm:$0x1]
        %v389 = vld [vmem:[%s317] sm:$0xff]
        %v390 = vld [vmem:[%s327] sm:$0xff]
        %v392 = vperm.slane %v387, 0
        %vm394 = vcmask 261120
        %v396 = vsel %vm394, %v389, 0
        %v399 = vsel %vm394, %v390, 0
        %401 = vmatpush.msra.mxu0 0.0
        %402 = vmatpush.msra.mxu0 0.0
        %403 = vmatpush.msra.mxu0 0.0
        %404 = vmatpush.msra.mxu0 0.0
        %405 = vmatpush.msra.mxu0 0.0
        %406 = vmatpush.msra.mxu0 0.0
        %407 = vmatpush.msra.mxu0 0.0
        %408 = vmatpush.msra.mxu0 0.0
        %409 = vmatpush.msra.mxu0 0.0
        %410 = vmatpush.msra.mxu0 0.0
        %411 = vmatpush.msra.mxu0 0.0
        %412 = vmatpush.msra.mxu0 0.0
        %413 = vmatpush.msra.mxu0 %v382
        %414 = vmatpush.msra.mxu0 %v381
        %415 = vmatpush.msra.mxu0 %v380
        %416 = vmatpush.msra.mxu0 %v379
        %417 = vmatmul.f32.gmra.mxu0 %v396
        %v418 = vpop.f32.mrf.mxu0
        %v419 = vadd.f32 %v392, %v418
        %420 = vmatmul.f32.gmra.mxu0 %v399
        %v421 = vpop.f32.mrf.mxu0
        %v422 = vadd.f32 %v392, %v421
        %423 = vdwg.mxu0
        %v424 = vmax.f32 %v419, 0.0
        %v425 = vmax.f32 %v422, 0.0
        %v427 = vperm.slane %v388, 0
        %v430 = vsel %vm394, %v424, 0
        %v433 = vsel %vm394, %v425, 0
        %435 = vmatpush.msra.mxu0 0.0
        %436 = vmatpush.msra.mxu0 0.0
        %437 = vmatpush.msra.mxu0 0.0
        %438 = vmatpush.msra.mxu0 0.0
        %439 = vmatpush.msra.mxu0 0.0
        %440 = vmatpush.msra.mxu0 0.0
        %441 = vmatpush.msra.mxu0 0.0
        %442 = vmatpush.msra.mxu0 0.0
        %443 = vmatpush.msra.mxu0 0.0
        %444 = vmatpush.msra.mxu0 0.0
        %445 = vmatpush.msra.mxu0 0.0
        %446 = vmatpush.msra.mxu0 0.0
        %447 = vmatpush.msra.mxu0 %v386
        %448 = vmatpush.msra.mxu0 %v385
        %449 = vmatpush.msra.mxu0 %v384
        %450 = vmatpush.msra.mxu0 %v383
        %451 = vmatmul.f32.gmra.mxu0 %v430
        %v452 = vpop.f32.mrf.mxu0
        %v453 = vadd.f32 %v427, %v452
        %454 = vmatmul.f32.gmra.mxu0 %v433
        %v455 = vpop.f32.mrf.mxu0
        %v456 = vadd.f32 %v427, %v455
        %457 = vdwg.mxu0
        %v458 = vmax.f32 %v453, 0.0
        %v459 = vmax.f32 %v456, 0.0
        %v461 = vsel %vm394, %v458, 0
        %v464 = vsel %vm394, %v459, 0
        %466 = vmatpush.xpose.msra.mxu0 0.0
        %467 = vmatpush.xpose.msra.mxu0 0.0
        %468 = vmatpush.xpose.msra.mxu0 0.0
        %469 = vmatpush.xpose.msra.mxu0 0.0
        %470 = vmatpush.xpose.msra.mxu0 0.0
        %471 = vmatpush.xpose.msra.mxu0 0.0
        %472 = vmatpush.xpose.msra.mxu0 0.0
        %473 = vmatpush.xpose.msra.mxu0 0.0
        %474 = vmatpush.xpose.msra.mxu0 0.0
        %475 = vmatpush.xpose.msra.mxu0 0.0
        %476 = vmatpush.xpose.msra.mxu0 0.0
        %477 = vmatpush.xpose.msra.mxu0 0.0
        %478 = vmatpush.xpose.msra.mxu0 0.0
        %479 = vmatpush.xpose.msra.mxu0 0.0
        %480 = vmatpush.xpose.msra.mxu0 0.0
        %481 = vmatpush.xpose.msra.mxu0 %v464
        %482 = vmatmul.f32.gmra.mxu0 %v461
        %v483 = vpop.f32.mrf.mxu0
        %v484 = vadd.f32 0.0, %v483
        %485 = vdwg.mxu0
        %vm486 = vcmask 64512
        %v487 = vsel %vm486, %v484, -inf
        %488 = vmax.xlane.f32.xlu0 %v487
        %v489 = vpop.xlane.xlu0 %488
        %v490 = vsub.f32 %v484, %v489
        %v491 = vmul.f32 %v490, 1.442695
        %v492 = vpow.pop %v491
        %v493 = vsel %vm486, %v492, 0.0
        %494 = vadd.xlane.f32.xlu0 %v493
        %v495 = vpop.xlane.xlu0 %494
        %v496 = vrcp.pop %v495
        %v497 = vmul.f32 %v495, %v496
        %v498 = vsub.f32 2.0, %v497
        %v499 = vmul.f32 %v496, %v498
        %v501 = vsel %vm486, %v492, 0
        %503 = vmatpush.msra.mxu0 0.0
        %504 = vmatpush.msra.mxu0 0.0
        %505 = vmatpush.msra.mxu0 0.0
        %506 = vmatpush.msra.mxu0 0.0
        %507 = vmatpush.msra.mxu0 0.0
        %508 = vmatpush.msra.mxu0 0.0
        %509 = vmatpush.msra.mxu0 0.0
        %510 = vmatpush.msra.mxu0 0.0
        %511 = vmatpush.msra.mxu0 0.0
        %512 = vmatpush.msra.mxu0 0.0
        %513 = vmatpush.msra.mxu0 0.0
        %514 = vmatpush.msra.mxu0 0.0
        %515 = vmatpush.msra.mxu0 0.0
        %516 = vmatpush.msra.mxu0 0.0
        %517 = vmatpush.msra.mxu0 0.0
        %518 = vmatpush.msra.mxu0 %v390
        %519 = vmatmul.f32.gmra.mxu0 %v501
        %v520 = vpop.f32.mrf.mxu0
        %v521 = vadd.f32 0.0, %v520
        %522 = vdwg.mxu0
        %v523 = vmul.f32 %v521, %v499
        %524 = vst.msk [vmem:[%s371] sm:$0xff] %vm394, %v523
        %v525 = vrot.slane %v487, 4
        %v526 = vmax.f32 %v487, %v525
        %v527 = vrot.slane %v526, 2
        %v528 = vmax.f32 %v526, %v527
        %v529 = vrot.slane %v528, 1
        %v530 = vmax.f32 %v528, %v529
        %v531 = vsub.f32 %v484, %v530
        %v532 = vmul.f32 %v531, 1.442695
        %v533 = vpow.pop %v532
        %v534 = vsel %vm486, %v533, 0.0
        %v535 = vrot.slane %v534, 4
        %v536 = vadd.f32 %v534, %v535
        %v537 = vrot.slane %v536, 2
        %v538 = vadd.f32 %v536, %v537
        %v539 = vrot.slane %v538, 1
        %v540 = vadd.f32 %v538, %v539
        %v541 = vrcp.pop %v540
        %v542 = vmul.f32 %v540, %v541
        %v543 = vsub.f32 2.0, %v542
        %v544 = vmul.f32 %v541, %v543
        %v545 = vmul.f32 %v533, %v544
        %546 = vxpose.xlu0.b32.start [1/16] %v545, 128
        %547 = vxpose.xlu0.b32.cont [2/16] 0.0, 128
        %548 = vxpose.xlu0.b32.cont [3/16] 0.0, 128
        %549 = vxpose.xlu0.b32.cont [4/16] 0.0, 128
        %550 = vxpose.xlu0.b32.cont [5/16] 0.0, 128
        %551 = vxpose.xlu0.b32.cont [6/16] 0.0, 128
        %552 = vxpose.xlu0.b32.cont [7/16] 0.0, 128
        %553 = vxpose.xlu0.b32.cont [8/16] 0.0, 128
        %554 = vxpose.xlu0.b32.cont [9/16] 0.0, 128
        %555 = vxpose.xlu0.b32.cont [10/16] 0.0, 128
        %556 = vxpose.xlu0.b32.cont [11/16] 0.0, 128
        %557 = vxpose.xlu0.b32.cont [12/16] 0.0, 128
        %558 = vxpose.xlu0.b32.cont [13/16] 0.0, 128
        %559 = vxpose.xlu0.b32.cont [14/16] 0.0, 128
        %560 = vxpose.xlu0.b32.cont [15/16] 0.0, 128
        %561 = vxpose.xlu0.b32.end [16/16] 0.0, 128
        %v562 = vpop.trf.xlu0
        %v563 = vpop.trf.xlu0
        %v564 = vpop.trf.xlu0
        %v565 = vpop.trf.xlu0
        %v566 = vpop.trf.xlu0
        %v567 = vpop.trf.xlu0
        %v568 = vpop.trf.xlu0
        %v569 = vpop.trf.xlu0
        %v570 = vpop.trf.xlu0
        %v571 = vpop.trf.xlu0
        %v572 = vpop.trf.xlu0
        %v573 = vpop.trf.xlu0
        %v574 = vpop.trf.xlu0
        %v575 = vpop.trf.xlu0
        %v576 = vpop.trf.xlu0
        %v577 = vpop.trf.xlu0
        %v579 = vsel %vm486, %v562, 0
        %581 = vmatpush.msra.mxu0 0.0
        %582 = vmatpush.msra.mxu0 0.0
        %583 = vmatpush.msra.mxu0 0.0
        %584 = vmatpush.msra.mxu0 0.0
        %585 = vmatpush.msra.mxu0 0.0
        %586 = vmatpush.msra.mxu0 0.0
        %587 = vmatpush.msra.mxu0 0.0
        %588 = vmatpush.msra.mxu0 0.0
        %589 = vmatpush.msra.mxu0 0.0
        %590 = vmatpush.msra.mxu0 0.0
        %591 = vmatpush.msra.mxu0 0.0
        %592 = vmatpush.msra.mxu0 0.0
        %593 = vmatpush.msra.mxu0 0.0
        %594 = vmatpush.msra.mxu0 0.0
        %595 = vmatpush.msra.mxu0 0.0
        %596 = vmatpush.msra.mxu0 %v389
        %597 = vmatmul.f32.gmra.mxu0 %v579
        %v598 = vpop.f32.mrf.mxu0
        %v599 = vadd.f32 0.0, %v598
        %600 = vdwg.mxu0
        %601 = vst.msk [vmem:[%s378] sm:$0xff] %vm394, %v599
        %s602 = sand.u32 %s176, 1
        %s603 = scalar_lea.sflag [#allocation4], %s602
        %s604 = sand.u32 %s176, 1
        %s605 = smul.addr %s604, 8
        %s606 = scalar_lea.vmem [#allocation10], %s605
        %s607 = sand.u32 %s202, 1
        %s608 = scalar_lea.sflag [#allocation12], %s607
        %s609 = sand.u32 %s202, 1
        %s610 = smul.addr %s609, 8
        %s611 = scalar_lea.vmem [#allocation11], %s610
        // Predicated region
        $region61: #{tpu_custom_call.1} parent=43 // pred_check
          %p612 = pneg %p186
        $region62: #{tpu_custom_call.1} parent=43 // pred_check_branch
          %614 = sbr.rel (%p612) target = $region64
        $region63: #{tpu_custom_call.1} parent=43 // pred_region
          %616 = vsyncadd %s603, 0
          %s617 = smul.addr %s32, 8
          %s618 = scalar_lea.hbm %s6, %s617
          %s620 = sshll.u32 %s606, 4
          %s621 = int_to_ptr.vmem [resolvable:$true] %s620
          %s622 = sshll.u32 %s618, 4
          %s623 = int_to_ptr.hbm [resolvable:$true] %s622
          %625 = dma.vmem_to_hbm [thread:$0]  %s621, 128, %s623, %s603
        $region64: #{tpu_custom_call.1} parent=43 // pred_fallthru
          _
        // Predicated region
        $region65: #{tpu_custom_call.1} parent=43 // pred_check
          %p626 = pneg %p212
        $region66: #{tpu_custom_call.1} parent=43 // pred_check_branch
          %628 = sbr.rel (%p626) target = $region68
        $region67: #{tpu_custom_call.1} parent=43 // pred_region
          %630 = vsyncadd %s608, 0
          %s631 = smul.addr %s32, 8
          %s632 = scalar_lea.hbm %s7, %s631
          %s634 = sshll.u32 %s611, 4
          %s635 = int_to_ptr.vmem [resolvable:$true] %s634
          %s636 = sshll.u32 %s632, 4
          %s637 = int_to_ptr.hbm [resolvable:$true] %s636
          %639 = dma.vmem_to_hbm [thread:$0]  %s635, 128, %s637, %s608
        $region68: #{tpu_custom_call.1} parent=43 // pred_fallthru
          _
      $region44: #{tpu_custom_call.1} parent=5 // pred_fallthru
        _
      %p640 = scmp.le.s32.totalorder 2, %s27
      // Predicated region
      $region69: #{tpu_custom_call.1} parent=5 // pred_check
        %p641 = pneg %p640
      $region70: #{tpu_custom_call.1} parent=5 // pred_check_branch
        %643 = sbr.rel (%p641) target = $region72
      $region71: #{tpu_custom_call.1} parent=5 // pred_region
        %s644 = ssub.s32 %s27, 2
        // Predicated region
        $region73: #{tpu_custom_call.1} parent=71 // pred_check
          %p645 = pneg %p192
        $region74: #{tpu_custom_call.1} parent=71 // pred_check_branch
          %647 = sbr.rel (%p645) target = $region76
        $region75: #{tpu_custom_call.1} parent=71 // pred_region
          %s648 = sand.u32 %s177, 1
          %s649 = scalar_lea.sflag [#allocation4], %s648
          %s650 = sand.u32 %s177, 1
          %s651 = smul.addr %s650, 8
          %s652 = scalar_lea.vmem [#allocation10], %s651
          %654 = dma.done %s649, 128
        $region76: #{tpu_custom_call.1} parent=71 // pred_fallthru
          _
        // Predicated region
        $region77: #{tpu_custom_call.1} parent=71 // pred_check
          %p655 = pneg %p218
        $region78: #{tpu_custom_call.1} parent=71 // pred_check_branch
          %657 = sbr.rel (%p655) target = $region80
        $region79: #{tpu_custom_call.1} parent=71 // pred_region
          %s658 = sand.u32 %s203, 1
          %s659 = scalar_lea.sflag [#allocation12], %s658
          %s660 = sand.u32 %s203, 1
          %s661 = smul.addr %s660, 8
          %s662 = scalar_lea.vmem [#allocation11], %s661
          %664 = dma.done %s659, 128
        $region80: #{tpu_custom_call.1} parent=71 // pred_fallthru
          _
      $region72: #{tpu_custom_call.1} parent=5 // pred_fallthru
        _
    $region6: #{tpu_custom_call.1} parent=1 // loop_footer
      %s31 = sadd.s32 1, %s27
    $region7: #{tpu_custom_call.1} parent=1 // loop_footer_branch
      %26 = sbr.rel target = $region3
    $region8: #{tpu_custom_call.1} parent=1 // loop_exit
      _
    %665 = vsyncpa [#allocation3], 1
    %s666 = scalar_lea.sflag [#allocation3], 1
    %667 = vsyncpa %s666, 1
    %668 = vsyncpa [#allocation6], 1
    %s669 = scalar_lea.sflag [#allocation6], 1
    %670 = vsyncpa %s669, 1
    %671 = vsyncpa [#allocation9], 1
    %672 = vsyncpa [#allocation4], 1
    %s673 = scalar_lea.sflag [#allocation4], 1
    %674 = vsyncpa %s673, 1
    %675 = vsyncpa [#allocation12], 1
    %s676 = scalar_lea.sflag [#allocation12], 1
    %677 = vsyncpa %s676, 1

</llo_original>
